<compile_context>
chip_gen: v6e
topology: v6e:2x2x1
jax: 0.10.0
libtpu: 0.0.40
codegen_flags: <defaults>
</compile_context>

<pallas_src>
import jax
import jax.numpy as jnp
from jax.experimental import pallas as pl
from jax.experimental.pallas import tpu as pltpu

IN_DIM = 28 * 28      # 784 — natural K of the first matmul (X is NOT padded in HBM)
IN_PAD = 896          # 7 * 128 — lane-aligned K used inside the kernel (zero padded)
H1 = 128
H2 = 64               # logical hidden width of layer 2
H2_PAD = 128          # lane-padded hidden width (padded weights/bias are zero)
OUT = 10              # logical number of classes (== stored output width)
OUT_PAD = 128         # lane width at which logits / log_softmax are computed

NEG_BIG = -1e30       # bias of padded logit columns -> exp() underflows to exactly 0

TB_MAX = 1024         # max batch tile


def _round_up(x, m):
    return (x + m - 1) // m * m


def _cdiv(a, b):
    return (a + b - 1) // b


def _pick_tb(batch):
    """Batch-tile choice: clamp for small batches (avoid DMAing a mostly-empty
    1024-row tile), amortize per-step overhead for large ones, and keep >= 2 grid
    steps when batch >= 512 so v7x's two TensorCores both get work on the
    'parallel' batch axis."""
    tb = max(8, min(TB_MAX, _round_up(batch, 8)))
    if batch >= 512 and _cdiv(batch, tb) < 2:
        tb = _round_up(_cdiv(batch, 2), 8)
    return tb


def mlp_kernel(x_ref, w1_ref, b1_ref, w2_ref, b2_ref, w3_ref, b3_ref, o_ref,
               xpad_ref):
    """Fused forward pass for one batch tile, entirely in VMEM.

    x_ref : (tb, 784)  f32   streamed batch tile (unpadded, straight from HBM)
    w1_ref: (896, 128) bf16  (rows 784: are zero)      b1_ref: (1, 128) f32
    w2_ref: (128, 128) bf16  (cols 64: are zero)       b2_ref: (1, 128) f32 (0 in pad)
    w3_ref: (128, 128) bf16  (rows 64:/cols 10: zero)  b3_ref: (1, 128) f32 (-1e30 pad)
    o_ref : (tb, 10)   f32   log-probabilities (thin, contiguous 40 B/row in HBM)
    xpad  : (tb, 896)  bf16  scratch: bf16-cast, lane-padded copy of the X tile
    """
    tb = xpad_ref.shape[0]

    # f32 -> bf16 cast + 784->896 lane pad, done in VMEM (hidden under the HBM DMA).
    # The pad columns are zeroed every step (cheap, ~0.2 MB of vst) so the result
    # is exact regardless of how the grid is sharded across TensorCores.
    xpad_ref[:, :IN_DIM] = x_ref[...].astype(xpad_ref.dtype)
    xpad_ref[:, IN_DIM:] = jnp.zeros((tb, IN_PAD - IN_DIM), xpad_ref.dtype)
    x = xpad_ref[...]

    # Linear1 + ReLU (bf16 MXU operands, f32 accumulate; bias/ReLU on the VPU in f32)
    h1 = jnp.dot(x, w1_ref[...], preferred_element_type=jnp.float32) + b1_ref[...]
    h1 = jnp.maximum(h1, 0.0)

    # Linear2 + ReLU (padded output columns have zero weights + zero bias -> stay 0)
    h2 = jnp.dot(h1.astype(w2_ref.dtype), w2_ref[...],
                 preferred_element_type=jnp.float32) + b2_ref[...]
    h2 = jnp.maximum(h2, 0.0)

    # Linear3; padded logit columns get bias -1e30 so exp() of them is exactly 0.
    logits = jnp.dot(h2.astype(w3_ref.dtype), w3_ref[...],
                     preferred_element_type=jnp.float32) + b3_ref[...]

    # Numerically stable log_softmax over the padded 128 lanes == log_softmax over
    # the 10 real logits (padded lanes contribute exp(-huge) == 0 to the sum).
    m = jnp.max(logits, axis=-1, keepdims=True)
    z = logits - m
    lse = jnp.log(jnp.sum(jnp.exp(z), axis=-1, keepdims=True))

    # Store only the 10 real columns.
    o_ref[...] = (z[:, :OUT] - lse).astype(o_ref.dtype)


@jax.jit
def modelo_forward(x, w1, b1, w2, b2, w3, b3):
    """Forward pass of `Modelo`. x: (B, 784) f32; weights stored (in, out)."""
    B = x.shape[0]
    tb = _pick_tb(B)
    grid = (_cdiv(B, tb),)

    cdtype = jnp.bfloat16

    # Weights/biases are tiny (~110K params): cast/pad them host-side (negligible).
    w1p = jnp.zeros((IN_PAD, H1), cdtype).at[:IN_DIM, :].set(w1.astype(cdtype))
    b1p = b1.reshape(1, H1).astype(jnp.float32)

    w2p = jnp.zeros((H1, H2_PAD), cdtype).at[:, :H2].set(w2.astype(cdtype))
    b2p = jnp.zeros((1, H2_PAD), jnp.float32).at[:, :H2].set(
        b2.reshape(1, H2).astype(jnp.float32))

    w3p = jnp.zeros((H2_PAD, OUT_PAD), cdtype).at[:H2, :OUT].set(w3.astype(cdtype))
    b3p = jnp.full((1, OUT_PAD), NEG_BIG, jnp.float32).at[:, :OUT].set(
        b3.reshape(1, OUT).astype(jnp.float32))

    def batch_map(i):
        return (i, 0)

    def full_map(i):
        return (0, 0)

    flops = 2 * B * (IN_PAD * H1 + H1 * H2_PAD + H2_PAD * OUT_PAD)
    transcendentals = B * (OUT_PAD + 1)     # exp per padded logit + log per row
    bytes_accessed = (
        B * IN_DIM * 4                                          # X read (f32, unpadded)
        + (IN_PAD * H1 + H1 * H2_PAD + H2_PAD * OUT_PAD) * 2    # bf16 weights
        + (H1 + H2_PAD + OUT_PAD) * 4                           # f32 biases
        + B * OUT * 4                                           # thin output
    )

    return pl.pallas_call(
        mlp_kernel,
        out_shape=jax.ShapeDtypeStruct((B, OUT), jnp.float32),
        grid_spec=pltpu.PrefetchScalarGridSpec(
            num_scalar_prefetch=0,
            grid=grid,
            in_specs=[
                pl.BlockSpec((tb, IN_DIM), batch_map),        # X tile (streamed)
                pl.BlockSpec((IN_PAD, H1), full_map),         # W1 (resident)
                pl.BlockSpec((1, H1), full_map),              # b1
                pl.BlockSpec((H1, H2_PAD), full_map),         # W2
                pl.BlockSpec((1, H2_PAD), full_map),          # b2
                pl.BlockSpec((H2_PAD, OUT_PAD), full_map),    # W3
                pl.BlockSpec((1, OUT_PAD), full_map),         # b3
            ],
            out_specs=pl.BlockSpec((tb, OUT), batch_map),     # thin (tb, 10) store
            scratch_shapes=[pltpu.VMEM((tb, IN_PAD), cdtype)],
        ),
        compiler_params=pltpu.CompilerParams(
            dimension_semantics=("parallel",),   # batch axis -> both TCs on v7x
        ),
        cost_estimate=pl.CostEstimate(
            flops=flops,
            transcendentals=transcendentals,
            bytes_accessed=bytes_accessed,
        ),
    )(x, w1p, b1p, w2p, b2p, w3p, b3p)


def init_params(key):
    """Deterministic PyTorch-style uniform init; weights stored (in, out)."""
    ks = jax.random.split(key, 6)

    def linear_init(kw, kb, fan_in, fan_out):
        bound = 1.0 / jnp.sqrt(fan_in)
        w = jax.random.uniform(kw, (fan_in, fan_out), jnp.float32, -bound, bound)
        b = jax.random.uniform(kb, (fan_out,), jnp.float32, -bound, bound)
        return w, b

    w1, b1 = linear_init(ks[0], ks[1], IN_DIM, H1)
    w2, b2 = linear_init(ks[2], ks[3], H1, H2)
    w3, b3 = linear_init(ks[4], ks[5], H2, OUT)
    return w1, b1, w2, b2, w3, b3


def reference_forward(x, w1, b1, w2, b2, w3, b3):
    """Pure-JAX f32 reference (matches the PyTorch module)."""
    h1 = jnp.maximum(x @ w1 + b1, 0.0)
    h2 = jnp.maximum(h1 @ w2 + b2, 0.0)
    logits = h2 @ w3 + b3
    return jax.nn.log_softmax(logits, axis=-1)


if __name__ == "__main__":
    key = jax.random.PRNGKey(0)
    kx, kp = jax.random.split(key)

    B = 8  # small demo batch; _pick_tb clamps the tile to it (no wasted DMA rows)
    x = jax.random.normal(kx, (B, IN_DIM), jnp.float32)

    params = init_params(kp)

    out = jax.block_until_ready(modelo_forward(x, *params))

    assert out.shape == (B, OUT)

    # log_softmax rows must sum (in prob space) to ~1 — exact f32 property of the kernel
    row_sums = jnp.sum(jnp.exp(out), axis=1)
    assert bool(jnp.all(jnp.abs(row_sums - 1.0) < 1e-4))

    # loose check against the f32 reference (bf16 matmul operands, f32 accumulation)
    ref = reference_forward(x, *params)
    assert bool(jnp.max(jnp.abs(out - ref)) < 0.1)

    print("KERNEL_OK")
</pallas_src>

<mosaic_0001>
module attributes {stable_mosaic.version = 11 : i64} {
  func.func @mlp_kernel(%arg0: i32, %arg1: memref<8x784xf32, #tpu.memory_space<vmem>>, %arg2: memref<896x128xbf16, #tpu.memory_space<vmem>>, %arg3: memref<1x128xf32, #tpu.memory_space<vmem>>, %arg4: memref<128x128xbf16, #tpu.memory_space<vmem>>, %arg5: memref<1x128xf32, #tpu.memory_space<vmem>>, %arg6: memref<128x128xbf16, #tpu.memory_space<vmem>>, %arg7: memref<1x128xf32, #tpu.memory_space<vmem>>, %arg8: memref<8x10xf32, #tpu.memory_space<vmem>>, %arg9: memref<8x896xbf16, #tpu.memory_space<vmem>>) attributes {dimension_semantics = [#tpu.dimension_semantics<parallel>], iteration_bounds = array<i64: 1>, scalar_prefetch = 0 : i64, scratch_operands = 1 : i64, tpu.core_type = #tpu.core_type<tc>, window_params = [{transform_indices = @transform_0, window_bounds = array<i64: 8, 784>}, {pipeline_mode = #tpu.pipeline_mode<synchronous>, transform_indices = @transform_1, window_bounds = array<i64: 896, 128>}, {pipeline_mode = #tpu.pipeline_mode<synchronous>, transform_indices = @transform_2, window_bounds = array<i64: 1, 128>}, {pipeline_mode = #tpu.pipeline_mode<synchronous>, transform_indices = @transform_3, window_bounds = array<i64: 128, 128>}, {pipeline_mode = #tpu.pipeline_mode<synchronous>, transform_indices = @transform_4, window_bounds = array<i64: 1, 128>}, {pipeline_mode = #tpu.pipeline_mode<synchronous>, transform_indices = @transform_5, window_bounds = array<i64: 128, 128>}, {pipeline_mode = #tpu.pipeline_mode<synchronous>, transform_indices = @transform_6, window_bounds = array<i64: 1, 128>}, {transform_indices = @transform_7, window_bounds = array<i64: 8, 10>}]} {
    %c0 = arith.constant 0 : index
    %c0_0 = arith.constant 0 : index
    %0 = vector.load %arg1[%c0, %c0_0] : memref<8x784xf32, #tpu.memory_space<vmem>>, vector<8x784xf32>
    %1 = arith.truncf %0 : vector<8x784xf32> to vector<8x784xbf16>
    %c0_1 = arith.constant 0 : index
    %c0_2 = arith.constant 0 : index
    %2 = vector.load %arg9[%c0_1, %c0_2] : memref<8x896xbf16, #tpu.memory_space<vmem>>, vector<8x784xbf16>
    tpu.vector_store %arg9[%c0_1, %c0_2], %1 {strides = array<i32>} : memref<8x896xbf16, #tpu.memory_space<vmem>>, vector<8x784xbf16>,
    %cst = arith.constant 0.000000e+00 : bf16
    %3 = vector.broadcast %cst : bf16 to vector<8x112xbf16>
    %c0_3 = arith.constant 0 : index
    %c784 = arith.constant 784 : index
    %4 = vector.load %arg9[%c0_3, %c784] : memref<8x896xbf16, #tpu.memory_space<vmem>>, vector<8x112xbf16>
    tpu.vector_store %arg9[%c0_3, %c784], %3 {strides = array<i32>} : memref<8x896xbf16, #tpu.memory_space<vmem>>, vector<8x112xbf16>,
    %c0_4 = arith.constant 0 : index
    %c0_5 = arith.constant 0 : index
    %5 = vector.load %arg9[%c0_4, %c0_5] : memref<8x896xbf16, #tpu.memory_space<vmem>>, vector<8x896xbf16>
    %c0_6 = arith.constant 0 : index
    %c0_7 = arith.constant 0 : index
    %6 = vector.load %arg2[%c0_6, %c0_7] : memref<896x128xbf16, #tpu.memory_space<vmem>>, vector<896x128xbf16>
    %cst_8 = arith.constant dense<0.000000e+00> : vector<8x128xf32>
    %7 = tpu.matmul %5, %6, %cst_8 {dimension_numbers = #tpu.dot_dimension_numbers<[1], [0], [0], [1], [0, 0, 1, 1], [], []>} : vector<8x896xbf16>, vector<896x128xbf16>, vector<8x128xf32> -> vector<8x128xf32>
    %c0_9 = arith.constant 0 : index
    %c0_10 = arith.constant 0 : index
    %8 = vector.load %arg3[%c0_9, %c0_10] : memref<1x128xf32, #tpu.memory_space<vmem>>, vector<1x128xf32>
    %9 = vector.broadcast %8 : vector<1x128xf32> to vector<8x128xf32>
    %10 = arith.addf %7, %9 : vector<8x128xf32>
    %cst_11 = arith.constant 0.000000e+00 : f32
    %11 = vector.broadcast %cst_11 : f32 to vector<8x128xf32>
    %12 = arith.maximumf %10, %11 : vector<8x128xf32>
    %13 = arith.truncf %12 : vector<8x128xf32> to vector<8x128xbf16>
    %c0_12 = arith.constant 0 : index
    %c0_13 = arith.constant 0 : index
    %14 = vector.load %arg4[%c0_12, %c0_13] : memref<128x128xbf16, #tpu.memory_space<vmem>>, vector<128x128xbf16>
    %cst_14 = arith.constant dense<0.000000e+00> : vector<8x128xf32>
    %15 = tpu.matmul %13, %14, %cst_14 {dimension_numbers = #tpu.dot_dimension_numbers<[1], [0], [0], [1], [0, 0, 1, 1], [], []>} : vector<8x128xbf16>, vector<128x128xbf16>, vector<8x128xf32> -> vector<8x128xf32>
    %c0_15 = arith.constant 0 : index
    %c0_16 = arith.constant 0 : index
    %16 = vector.load %arg5[%c0_15, %c0_16] : memref<1x128xf32, #tpu.memory_space<vmem>>, vector<1x128xf32>
    %17 = vector.broadcast %16 : vector<1x128xf32> to vector<8x128xf32>
    %18 = arith.addf %15, %17 : vector<8x128xf32>
    %cst_17 = arith.constant 0.000000e+00 : f32
    %19 = vector.broadcast %cst_17 : f32 to vector<8x128xf32>
    %20 = arith.maximumf %18, %19 : vector<8x128xf32>
    %21 = arith.truncf %20 : vector<8x128xf32> to vector<8x128xbf16>
    %c0_18 = arith.constant 0 : index
    %c0_19 = arith.constant 0 : index
    %22 = vector.load %arg6[%c0_18, %c0_19] : memref<128x128xbf16, #tpu.memory_space<vmem>>, vector<128x128xbf16>
    %cst_20 = arith.constant dense<0.000000e+00> : vector<8x128xf32>
    %23 = tpu.matmul %21, %22, %cst_20 {dimension_numbers = #tpu.dot_dimension_numbers<[1], [0], [0], [1], [0, 0, 1, 1], [], []>} : vector<8x128xbf16>, vector<128x128xbf16>, vector<8x128xf32> -> vector<8x128xf32>
    %c0_21 = arith.constant 0 : index
    %c0_22 = arith.constant 0 : index
    %24 = vector.load %arg7[%c0_21, %c0_22] : memref<1x128xf32, #tpu.memory_space<vmem>>, vector<1x128xf32>
    %25 = vector.broadcast %24 : vector<1x128xf32> to vector<8x128xf32>
    %26 = arith.addf %23, %25 : vector<8x128xf32>
    %cst_23 = arith.constant dense<0xFF800000> : vector<8xf32>
    %27 = vector.multi_reduction <maximumf>, %26, %cst_23 [1] : vector<8x128xf32> to vector<8xf32>
    %28 = vector.shape_cast %27 : vector<8xf32> to vector<8x1xf32>
    %29 = vector.broadcast %28 : vector<8x1xf32> to vector<8x128xf32>
    %30 = arith.subf %26, %29 : vector<8x128xf32>
    %31 = math.exp %30 : vector<8x128xf32>
    %cst_24 = arith.constant dense<0.000000e+00> : vector<8xf32>
    %32 = vector.multi_reduction <add>, %31, %cst_24 [1] : vector<8x128xf32> to vector<8xf32>
    %33 = vector.shape_cast %32 : vector<8xf32> to vector<8x1xf32>
    %34 = math.log %33 : vector<8x1xf32>
    %35 = vector.extract_strided_slice %30 {offsets = [0, 0], sizes = [8, 10], strides = [1, 1]} : vector<8x128xf32> to vector<8x10xf32>
    %36 = vector.broadcast %34 : vector<8x1xf32> to vector<8x10xf32>
    %37 = arith.subf %35, %36 : vector<8x10xf32>
    %c0_25 = arith.constant 0 : index
    %c0_26 = arith.constant 0 : index
    %38 = vector.load %arg8[%c0_25, %c0_26] : memref<8x10xf32, #tpu.memory_space<vmem>>, vector<8x10xf32>
    tpu.vector_store %arg8[%c0_25, %c0_26], %37 {strides = array<i32>} : memref<8x10xf32, #tpu.memory_space<vmem>>, vector<8x10xf32>,
    return
  }
  func.func @transform_0(%arg0: i32) -> (i32, i32) {
    %c0_i32 = arith.constant 0 : i32
    %c0_i32_0 = arith.constant 0 : i32
    return %arg0, %c0_i32 : i32, i32
  }
  func.func @transform_1(%arg0: i32) -> (i32, i32) {
    %c0_i32 = arith.constant 0 : i32
    %c0_i32_0 = arith.constant 0 : i32
    %c0_i32_1 = arith.constant 0 : i32
    return %c0_i32, %c0_i32_0 : i32, i32
  }
  func.func @transform_2(%arg0: i32) -> (i32, i32) {
    %c0_i32 = arith.constant 0 : i32
    %c0_i32_0 = arith.constant 0 : i32
    %c0_i32_1 = arith.constant 0 : i32
    return %c0_i32, %c0_i32_0 : i32, i32
  }
  func.func @transform_3(%arg0: i32) -> (i32, i32) {
    %c0_i32 = arith.constant 0 : i32
    %c0_i32_0 = arith.constant 0 : i32
    %c0_i32_1 = arith.constant 0 : i32
    return %c0_i32, %c0_i32_0 : i32, i32
  }
  func.func @transform_4(%arg0: i32) -> (i32, i32) {
    %c0_i32 = arith.constant 0 : i32
    %c0_i32_0 = arith.constant 0 : i32
    %c0_i32_1 = arith.constant 0 : i32
    return %c0_i32, %c0_i32_0 : i32, i32
  }
  func.func @transform_5(%arg0: i32) -> (i32, i32) {
    %c0_i32 = arith.constant 0 : i32
    %c0_i32_0 = arith.constant 0 : i32
    %c0_i32_1 = arith.constant 0 : i32
    return %c0_i32, %c0_i32_0 : i32, i32
  }
  func.func @transform_6(%arg0: i32) -> (i32, i32) {
    %c0_i32 = arith.constant 0 : i32
    %c0_i32_0 = arith.constant 0 : i32
    %c0_i32_1 = arith.constant 0 : i32
    return %c0_i32, %c0_i32_0 : i32, i32
  }
  func.func @transform_7(%arg0: i32) -> (i32, i32) {
    %c0_i32 = arith.constant 0 : i32
    %c0_i32_0 = arith.constant 0 : i32
    return %arg0, %c0_i32 : i32, i32
  }
}

</mosaic_0001>

<llo_original>
// kernel: modelo_forward.1
$region0: #{modelo_forward.1}
  #allocation0 [shape = 'u32[]', space=smem, size = 0x4, offset = 0x4, fixed_abs, tag = 'smem constant byte address 0x4 - core index']
  #allocation1 [shape = 'u32[144,128]{1,0:T(1,128)}', space=vmem, size = 0x12000, scoped, tag = 'internal scratch']
  #allocation2 [shape = 'bf16[8,896]{1,0:T(8,128)(2,1)}', space=vmem, size = 0x3800, scoped, tag = 'scratch operand']
  %s0 = inlined_call_operand.vmem [shape: f32[8,784], index: 0, kind: input, shape index: {}]
  %s1 = inlined_call_operand.vmem [shape: bf16[896,128], index: 1, kind: input, shape index: {}]
  %s2 = inlined_call_operand.vmem [shape: f32[1,128], index: 2, kind: input, shape index: {}]
  %s3 = inlined_call_operand.vmem [shape: bf16[128,128], index: 3, kind: input, shape index: {}]
  %s4 = inlined_call_operand.vmem [shape: f32[1,128], index: 4, kind: input, shape index: {}]
  %s5 = inlined_call_operand.vmem [shape: bf16[128,128], index: 5, kind: input, shape index: {}]
  %s6 = inlined_call_operand.vmem [shape: f32[1,128], index: 6, kind: input, shape index: {}]
  %s7 = inlined_call_operand.hbm [shape: f32[8,10], index: 7, kind: output, shape index: {}]
  %s8 = sld [smem:[#allocation0]]
  $region38: #{modelo_forward.1} parent=0
    _
  %s10 = ssub.s32 1, %s8
  %s11 = scalar_select 0, %s10, %s8
  $region1: #{modelo_forward.1} parent=0
    #allocation3 [shape = 'u8[4096]{0}', space=vmem, size = 0x1000, scoped, tag = 'output window, operand 0, single buffered']
    #allocation4 [shape = 's32[1]{0}', space=sflag, size = 0x4, scoped, tag = 'scoped memory for modelo_forward.1']
    %12 = vsyncpa [#allocation4], 0
    // Predicated region
    $region2: #{modelo_forward.1} parent=1 // pred_check
      _
    $region3: #{modelo_forward.1} parent=1 // pred_check_branch
      %14 = sbr.rel (0) target = $region5
    $region4: #{modelo_forward.1} parent=1 // pred_region
      _
    $region5: #{modelo_forward.1} parent=1 // pred_fallthru
      _
    // Predicated region
    $region6: #{modelo_forward.1} parent=1 // pred_check
      _
    $region7: #{modelo_forward.1} parent=1 // pred_check_branch
      %16 = sbr.rel (0) target = $region9
    $region8: #{modelo_forward.1} parent=1 // pred_region
      _
    $region9: #{modelo_forward.1} parent=1 // pred_fallthru
      _
    // Predicated region
    $region10: #{modelo_forward.1} parent=1 // pred_check
      _
    $region11: #{modelo_forward.1} parent=1 // pred_check_branch
      %18 = sbr.rel (0) target = $region13
    $region12: #{modelo_forward.1} parent=1 // pred_region
      _
    $region13: #{modelo_forward.1} parent=1 // pred_fallthru
      _
    // Predicated region
    $region14: #{modelo_forward.1} parent=1 // pred_check
      _
    $region15: #{modelo_forward.1} parent=1 // pred_check_branch
      %20 = sbr.rel (0) target = $region17
    $region16: #{modelo_forward.1} parent=1 // pred_region
      _
    $region17: #{modelo_forward.1} parent=1 // pred_fallthru
      _
    // Predicated region
    $region18: #{modelo_forward.1} parent=1 // pred_check
      _
    $region19: #{modelo_forward.1} parent=1 // pred_check_branch
      %22 = sbr.rel (0) target = $region21
    $region20: #{modelo_forward.1} parent=1 // pred_region
      _
    $region21: #{modelo_forward.1} parent=1 // pred_fallthru
      _
    // Predicated region
    $region22: #{modelo_forward.1} parent=1 // pred_check
      _
    $region23: #{modelo_forward.1} parent=1 // pred_check_branch
      %24 = sbr.rel (0) target = $region25
    $region24: #{modelo_forward.1} parent=1 // pred_region
      _
    $region25: #{modelo_forward.1} parent=1 // pred_fallthru
      _
    // Predicated region
    $region26: #{modelo_forward.1} parent=1 // pred_check
      _
    $region27: #{modelo_forward.1} parent=1 // pred_check_branch
      %26 = sbr.rel (0) target = $region29
    $region28: #{modelo_forward.1} parent=1 // pred_region
      _
    $region29: #{modelo_forward.1} parent=1 // pred_fallthru
      _
    %v28 = vld [vmem:[%s0] sm:$0xff]
    %v29 = vld [vmem:[%s0 + $0x8] sm:$0xff]
    %v30 = vld [vmem:[%s0 + $0x10] sm:$0xff]
    %v31 = vld [vmem:[%s0 + $0x18] sm:$0xff]
    %v32 = vld [vmem:[%s0 + $0x20] sm:$0xff]
    %v33 = vld [vmem:[%s0 + $0x28] sm:$0xff]
    %v34 = vld [vmem:[%s0 + $0x30] sm:$0xff]
    %v35 = vpack.c.bf16 %v28, %v28
    %v36 = vpack.c.bf16 %v29, %v29
    %v37 = vpack.c.bf16 %v30, %v30
    %v38 = vpack.c.bf16 %v31, %v31
    %v39 = vpack.c.bf16 %v32, %v32
    %v40 = vpack.c.bf16 %v33, %v33
    %v41 = vpack.c.bf16 %v34, %v34
    %v49 = vunpack.c.l.b16 %v35
    %v50 = vunpack.c.l.b16 %v36
    %v51 = vunpack.c.l.b16 %v37
    %v52 = vunpack.c.l.b16 %v38
    %v53 = vunpack.c.l.b16 %v39
    %v54 = vunpack.c.l.b16 %v40
    %v55 = vunpack.c.l.b16 %v41
    %v56 = vpack.c.b16 %v50, %v49
    %v57 = vpack.c.b16 %v52, %v51
    %v58 = vpack.c.b16 %v54, %v53
    %v59 = vpack.c.b16 %v55, %v55
    %64 = vst [vmem:[#allocation2] sm:$0xff] %v56
    %65 = vst [vmem:[#allocation2 + $0x8] sm:$0xff] %v57
    %66 = vst [vmem:[#allocation2 + $0x10] sm:$0xff] %v58
    %vm67 = vcmask 125952
    %68 = vst.msk [vmem:[#allocation2 + $0x18] sm:$0xf] %vm67, %v59
    %vm69 = vcmask 1043584
    %70 = vst.msk [vmem:[#allocation2 + $0x18] sm:$0xf] %vm69, 0
    %v71 = vld [vmem:[#allocation2] sm:$0xff]
    %v72 = vld [vmem:[#allocation2 + $0x8] sm:$0xff]
    %v73 = vld [vmem:[#allocation2 + $0x10] sm:$0xff]
    %v74 = vld [vmem:[#allocation2 + $0x18] sm:$0xf]
    %v75 = vld [vmem:[%s1] sm:$0xf]
    %v76 = vld [vmem:[%s1 + $0x4] sm:$0xf]
    %v77 = vld [vmem:[%s1 + $0x8] sm:$0xf]
    %v78 = vld [vmem:[%s1 + $0xc] sm:$0xf]
    %v79 = vld [vmem:[%s1 + $0x10] sm:$0xf]
    %v80 = vld [vmem:[%s1 + $0x14] sm:$0xf]
    %v81 = vld [vmem:[%s1 + $0x18] sm:$0xf]
    %v82 = vld [vmem:[%s1 + $0x1c] sm:$0xf]
    %v83 = vld [vmem:[%s1 + $0x20] sm:$0xf]
    %v84 = vld [vmem:[%s1 + $0x24] sm:$0xf]
    %v85 = vld [vmem:[%s1 + $0x28] sm:$0xf]
    %v86 = vld [vmem:[%s1 + $0x2c] sm:$0xf]
    %v87 = vld [vmem:[%s1 + $0x30] sm:$0xf]
    %v88 = vld [vmem:[%s1 + $0x34] sm:$0xf]
    %v89 = vld [vmem:[%s1 + $0x38] sm:$0xf]
    %v90 = vld [vmem:[%s1 + $0x3c] sm:$0xf]
    %v91 = vld [vmem:[%s1 + $0x40] sm:$0xf]
    %v92 = vld [vmem:[%s1 + $0x44] sm:$0xf]
    %v93 = vld [vmem:[%s1 + $0x48] sm:$0xf]
    %v94 = vld [vmem:[%s1 + $0x4c] sm:$0xf]
    %v95 = vld [vmem:[%s1 + $0x50] sm:$0xf]
    %v96 = vld [vmem:[%s1 + $0x54] sm:$0xf]
    %v97 = vld [vmem:[%s1 + $0x58] sm:$0xf]
    %v98 = vld [vmem:[%s1 + $0x5c] sm:$0xf]
    %v99 = vld [vmem:[%s1 + $0x60] sm:$0xf]
    %v100 = vld [vmem:[%s1 + $0x64] sm:$0xf]
    %v101 = vld [vmem:[%s1 + $0x68] sm:$0xf]
    %v102 = vld [vmem:[%s1 + $0x6c] sm:$0xf]
    %v103 = vld [vmem:[%s1 + $0x70] sm:$0xf]
    %v104 = vld [vmem:[%s1 + $0x74] sm:$0xf]
    %v105 = vld [vmem:[%s1 + $0x78] sm:$0xf]
    %v106 = vld [vmem:[%s1 + $0x7c] sm:$0xf]
    %v107 = vld [vmem:[%s1 + $0x80] sm:$0xf]
    %v108 = vld [vmem:[%s1 + $0x84] sm:$0xf]
    %v109 = vld [vmem:[%s1 + $0x88] sm:$0xf]
    %v110 = vld [vmem:[%s1 + $0x8c] sm:$0xf]
    %v111 = vld [vmem:[%s1 + $0x90] sm:$0xf]
    %v112 = vld [vmem:[%s1 + $0x94] sm:$0xf]
    %v113 = vld [vmem:[%s1 + $0x98] sm:$0xf]
    %v114 = vld [vmem:[%s1 + $0x9c] sm:$0xf]
    %v115 = vld [vmem:[%s1 + $0xa0] sm:$0xf]
    %v116 = vld [vmem:[%s1 + $0xa4] sm:$0xf]
    %v117 = vld [vmem:[%s1 + $0xa8] sm:$0xf]
    %v118 = vld [vmem:[%s1 + $0xac] sm:$0xf]
    %v119 = vld [vmem:[%s1 + $0xb0] sm:$0xf]
    %v120 = vld [vmem:[%s1 + $0xb4] sm:$0xf]
    %v121 = vld [vmem:[%s1 + $0xb8] sm:$0xf]
    %v122 = vld [vmem:[%s1 + $0xbc] sm:$0xf]
    %v123 = vld [vmem:[%s1 + $0xc0] sm:$0xf]
    %v124 = vld [vmem:[%s1 + $0xc4] sm:$0xf]
    %v125 = vld [vmem:[%s1 + $0xc8] sm:$0xf]
    %v126 = vld [vmem:[%s1 + $0xcc] sm:$0xf]
    %v127 = vld [vmem:[%s1 + $0xd0] sm:$0xf]
    %v128 = vld [vmem:[%s1 + $0xd4] sm:$0xf]
    %v129 = vld [vmem:[%s1 + $0xd8] sm:$0xf]
    %v130 = vld [vmem:[%s1 + $0xdc] sm:$0xf]
    %v131 = vld [vmem:[%s1 + $0xe0] sm:$0xf]
    %v132 = vld [vmem:[%s1 + $0xe4] sm:$0xf]
    %v133 = vld [vmem:[%s1 + $0xe8] sm:$0xf]
    %v134 = vld [vmem:[%s1 + $0xec] sm:$0xf]
    %v135 = vld [vmem:[%s1 + $0xf0] sm:$0xf]
    %v136 = vld [vmem:[%s1 + $0xf4] sm:$0xf]
    %v137 = vld [vmem:[%s1 + $0xf8] sm:$0xf]
    %v138 = vld [vmem:[%s1 + $0xfc] sm:$0xf]
    %v139 = vld [vmem:[%s1 + $0x100] sm:$0xf]
    %v140 = vld [vmem:[%s1 + $0x104] sm:$0xf]
    %v141 = vld [vmem:[%s1 + $0x108] sm:$0xf]
    %v142 = vld [vmem:[%s1 + $0x10c] sm:$0xf]
    %v143 = vld [vmem:[%s1 + $0x110] sm:$0xf]
    %v144 = vld [vmem:[%s1 + $0x114] sm:$0xf]
    %v145 = vld [vmem:[%s1 + $0x118] sm:$0xf]
    %v146 = vld [vmem:[%s1 + $0x11c] sm:$0xf]
    %v147 = vld [vmem:[%s1 + $0x120] sm:$0xf]
    %v148 = vld [vmem:[%s1 + $0x124] sm:$0xf]
    %v149 = vld [vmem:[%s1 + $0x128] sm:$0xf]
    %v150 = vld [vmem:[%s1 + $0x12c] sm:$0xf]
    %v151 = vld [vmem:[%s1 + $0x130] sm:$0xf]
    %v152 = vld [vmem:[%s1 + $0x134] sm:$0xf]
    %v153 = vld [vmem:[%s1 + $0x138] sm:$0xf]
    %v154 = vld [vmem:[%s1 + $0x13c] sm:$0xf]
    %v155 = vld [vmem:[%s1 + $0x140] sm:$0xf]
    %v156 = vld [vmem:[%s1 + $0x144] sm:$0xf]
    %v157 = vld [vmem:[%s1 + $0x148] sm:$0xf]
    %v158 = vld [vmem:[%s1 + $0x14c] sm:$0xf]
    %v159 = vld [vmem:[%s1 + $0x150] sm:$0xf]
    %v160 = vld [vmem:[%s1 + $0x154] sm:$0xf]
    %v161 = vld [vmem:[%s1 + $0x158] sm:$0xf]
    %v162 = vld [vmem:[%s1 + $0x15c] sm:$0xf]
    %v163 = vld [vmem:[%s1 + $0x160] sm:$0xf]
    %v164 = vld [vmem:[%s1 + $0x164] sm:$0xf]
    %v165 = vld [vmem:[%s1 + $0x168] sm:$0xf]
    %v166 = vld [vmem:[%s1 + $0x16c] sm:$0xf]
    %v167 = vld [vmem:[%s1 + $0x170] sm:$0xf]
    %v168 = vld [vmem:[%s1 + $0x174] sm:$0xf]
    %v169 = vld [vmem:[%s1 + $0x178] sm:$0xf]
    %v170 = vld [vmem:[%s1 + $0x17c] sm:$0xf]
    %v171 = vld [vmem:[%s1 + $0x180] sm:$0xf]
    %v172 = vld [vmem:[%s1 + $0x184] sm:$0xf]
    %v173 = vld [vmem:[%s1 + $0x188] sm:$0xf]
    %v174 = vld [vmem:[%s1 + $0x18c] sm:$0xf]
    %v175 = vld [vmem:[%s1 + $0x190] sm:$0xf]
    %v176 = vld [vmem:[%s1 + $0x194] sm:$0xf]
    %v177 = vld [vmem:[%s1 + $0x198] sm:$0xf]
    %v178 = vld [vmem:[%s1 + $0x19c] sm:$0xf]
    %v179 = vld [vmem:[%s1 + $0x1a0] sm:$0xf]
    %v180 = vld [vmem:[%s1 + $0x1a4] sm:$0xf]
    %v181 = vld [vmem:[%s1 + $0x1a8] sm:$0xf]
    %v182 = vld [vmem:[%s1 + $0x1ac] sm:$0xf]
    %v183 = vld [vmem:[%s1 + $0x1b0] sm:$0xf]
    %v184 = vld [vmem:[%s1 + $0x1b4] sm:$0xf]
    %v185 = vld [vmem:[%s1 + $0x1b8] sm:$0xf]
    %v186 = vld [vmem:[%s1 + $0x1bc] sm:$0xf]
    %v187 = vld [vmem:[%s2] sm:$0x1]
    %v189 = vlaneseq
    %v190 = vshrl.u32 %v189, 7
    %v191 = vsub.s32 0, %v190
    %v192 = vrot.slane %v187, %v191
    %v198 = vunpack.c.l.b16 %v71
    %v199 = vunpack.c.h.b16 %v71
    %v200 = vunpack.c.l.b16 %v72
    %v201 = vunpack.c.h.b16 %v72
    %v202 = vunpack.c.l.b16 %v73
    %v203 = vunpack.c.h.b16 %v73
    %v204 = vunpack.c.l.b16 %v74
    %v205 = vpack.c.b16 %v198, %v198
    %v206 = vpack.c.b16 %v199, %v199
    %v207 = vpack.c.b16 %v200, %v200
    %v208 = vpack.c.b16 %v201, %v201
    %v209 = vpack.c.b16 %v202, %v202
    %v210 = vpack.c.b16 %v203, %v203
    %v211 = vpack.c.b16 %v204, %v204
    %v331 = vunpack.c.l.b16 %v75
    %v332 = vunpack.c.l.b16 %v76
    %v333 = vunpack.c.l.b16 %v77
    %v334 = vunpack.c.l.b16 %v78
    %v335 = vunpack.c.l.b16 %v79
    %v336 = vunpack.c.l.b16 %v80
    %v337 = vunpack.c.l.b16 %v81
    %v338 = vunpack.c.l.b16 %v82
    %v339 = vunpack.c.l.b16 %v83
    %v340 = vunpack.c.l.b16 %v84
    %v341 = vunpack.c.l.b16 %v85
    %v342 = vunpack.c.l.b16 %v86
    %v343 = vunpack.c.l.b16 %v87
    %v344 = vunpack.c.l.b16 %v88
    %v345 = vunpack.c.l.b16 %v89
    %v346 = vunpack.c.l.b16 %v90
    %v347 = vunpack.c.l.b16 %v91
    %v348 = vunpack.c.l.b16 %v92
    %v349 = vunpack.c.l.b16 %v93
    %v350 = vunpack.c.l.b16 %v94
    %v351 = vunpack.c.l.b16 %v95
    %v352 = vunpack.c.l.b16 %v96
    %v353 = vunpack.c.l.b16 %v97
    %v354 = vunpack.c.l.b16 %v98
    %v355 = vunpack.c.l.b16 %v99
    %v356 = vunpack.c.l.b16 %v100
    %v357 = vunpack.c.l.b16 %v101
    %v358 = vunpack.c.l.b16 %v102
    %v359 = vunpack.c.l.b16 %v103
    %v360 = vunpack.c.l.b16 %v104
    %v361 = vunpack.c.l.b16 %v105
    %v362 = vunpack.c.l.b16 %v106
    %v363 = vunpack.c.l.b16 %v107
    %v364 = vunpack.c.l.b16 %v108
    %v365 = vunpack.c.l.b16 %v109
    %v366 = vunpack.c.l.b16 %v110
    %v367 = vunpack.c.l.b16 %v111
    %v368 = vunpack.c.l.b16 %v112
    %v369 = vunpack.c.l.b16 %v113
    %v370 = vunpack.c.l.b16 %v114
    %v371 = vunpack.c.l.b16 %v115
    %v372 = vunpack.c.l.b16 %v116
    %v373 = vunpack.c.l.b16 %v117
    %v374 = vunpack.c.l.b16 %v118
    %v375 = vunpack.c.l.b16 %v119
    %v376 = vunpack.c.l.b16 %v120
    %v377 = vunpack.c.l.b16 %v121
    %v378 = vunpack.c.l.b16 %v122
    %v379 = vunpack.c.l.b16 %v123
    %v380 = vunpack.c.l.b16 %v124
    %v381 = vunpack.c.l.b16 %v125
    %v382 = vunpack.c.l.b16 %v126
    %v383 = vunpack.c.l.b16 %v127
    %v384 = vunpack.c.l.b16 %v128
    %v385 = vunpack.c.l.b16 %v129
    %v386 = vunpack.c.l.b16 %v130
    %v387 = vunpack.c.l.b16 %v131
    %v388 = vunpack.c.l.b16 %v132
    %v389 = vunpack.c.l.b16 %v133
    %v390 = vunpack.c.l.b16 %v134
    %v391 = vunpack.c.l.b16 %v135
    %v392 = vunpack.c.l.b16 %v136
    %v393 = vunpack.c.l.b16 %v137
    %v394 = vunpack.c.l.b16 %v138
    %v395 = vunpack.c.l.b16 %v139
    %v396 = vunpack.c.l.b16 %v140
    %v397 = vunpack.c.l.b16 %v141
    %v398 = vunpack.c.l.b16 %v142
    %v399 = vunpack.c.l.b16 %v143
    %v400 = vunpack.c.l.b16 %v144
    %v401 = vunpack.c.l.b16 %v145
    %v402 = vunpack.c.l.b16 %v146
    %v403 = vunpack.c.l.b16 %v147
    %v404 = vunpack.c.l.b16 %v148
    %v405 = vunpack.c.l.b16 %v149
    %v406 = vunpack.c.l.b16 %v150
    %v407 = vunpack.c.l.b16 %v151
    %v408 = vunpack.c.l.b16 %v152
    %v409 = vunpack.c.l.b16 %v153
    %v410 = vunpack.c.l.b16 %v154
    %v411 = vunpack.c.l.b16 %v155
    %v412 = vunpack.c.l.b16 %v156
    %v413 = vunpack.c.l.b16 %v157
    %v414 = vunpack.c.l.b16 %v158
    %v415 = vunpack.c.l.b16 %v159
    %v416 = vunpack.c.l.b16 %v160
    %v417 = vunpack.c.l.b16 %v161
    %v418 = vunpack.c.l.b16 %v162
    %v419 = vunpack.c.l.b16 %v163
    %v420 = vunpack.c.l.b16 %v164
    %v421 = vunpack.c.l.b16 %v165
    %v422 = vunpack.c.l.b16 %v166
    %v423 = vunpack.c.l.b16 %v167
    %v424 = vunpack.c.l.b16 %v168
    %v425 = vunpack.c.l.b16 %v169
    %v426 = vunpack.c.l.b16 %v170
    %v427 = vunpack.c.l.b16 %v171
    %v428 = vunpack.c.l.b16 %v172
    %v429 = vunpack.c.l.b16 %v173
    %v430 = vunpack.c.l.b16 %v174
    %v431 = vunpack.c.l.b16 %v175
    %v432 = vunpack.c.l.b16 %v176
    %v433 = vunpack.c.l.b16 %v177
    %v434 = vunpack.c.l.b16 %v178
    %v435 = vunpack.c.l.b16 %v179
    %v436 = vunpack.c.l.b16 %v180
    %v437 = vunpack.c.l.b16 %v181
    %v438 = vunpack.c.l.b16 %v182
    %v439 = vunpack.c.l.b16 %v183
    %v440 = vunpack.c.l.b16 %v184
    %v441 = vunpack.c.l.b16 %v185
    %v442 = vunpack.c.l.b16 %v186
    %v443 = vpack.c.b16 %v332, %v331
    %v444 = vpack.c.b16 %v334, %v333
    %v445 = vpack.c.b16 %v336, %v335
    %v446 = vpack.c.b16 %v338, %v337
    %v447 = vpack.c.b16 %v340, %v339
    %v448 = vpack.c.b16 %v342, %v341
    %v449 = vpack.c.b16 %v344, %v343
    %v450 = vpack.c.b16 %v346, %v345
    %v451 = vpack.c.b16 %v348, %v347
    %v452 = vpack.c.b16 %v350, %v349
    %v453 = vpack.c.b16 %v352, %v351
    %v454 = vpack.c.b16 %v354, %v353
    %v455 = vpack.c.b16 %v356, %v355
    %v456 = vpack.c.b16 %v358, %v357
    %v457 = vpack.c.b16 %v360, %v359
    %v458 = vpack.c.b16 %v362, %v361
    %v459 = vpack.c.b16 %v364, %v363
    %v460 = vpack.c.b16 %v366, %v365
    %v461 = vpack.c.b16 %v368, %v367
    %v462 = vpack.c.b16 %v370, %v369
    %v463 = vpack.c.b16 %v372, %v371
    %v464 = vpack.c.b16 %v374, %v373
    %v465 = vpack.c.b16 %v376, %v375
    %v466 = vpack.c.b16 %v378, %v377
    %v467 = vpack.c.b16 %v380, %v379
    %v468 = vpack.c.b16 %v382, %v381
    %v469 = vpack.c.b16 %v384, %v383
    %v470 = vpack.c.b16 %v386, %v385
    %v471 = vpack.c.b16 %v388, %v387
    %v472 = vpack.c.b16 %v390, %v389
    %v473 = vpack.c.b16 %v392, %v391
    %v474 = vpack.c.b16 %v394, %v393
    %v475 = vpack.c.b16 %v396, %v395
    %v476 = vpack.c.b16 %v398, %v397
    %v477 = vpack.c.b16 %v400, %v399
    %v478 = vpack.c.b16 %v402, %v401
    %v479 = vpack.c.b16 %v404, %v403
    %v480 = vpack.c.b16 %v406, %v405
    %v481 = vpack.c.b16 %v408, %v407
    %v482 = vpack.c.b16 %v410, %v409
    %v483 = vpack.c.b16 %v412, %v411
    %v484 = vpack.c.b16 %v414, %v413
    %v485 = vpack.c.b16 %v416, %v415
    %v486 = vpack.c.b16 %v418, %v417
    %v487 = vpack.c.b16 %v420, %v419
    %v488 = vpack.c.b16 %v422, %v421
    %v489 = vpack.c.b16 %v424, %v423
    %v490 = vpack.c.b16 %v426, %v425
    %v491 = vpack.c.b16 %v428, %v427
    %v492 = vpack.c.b16 %v430, %v429
    %v493 = vpack.c.b16 %v432, %v431
    %v494 = vpack.c.b16 %v434, %v433
    %v495 = vpack.c.b16 %v436, %v435
    %v496 = vpack.c.b16 %v438, %v437
    %v497 = vpack.c.b16 %v440, %v439
    %v498 = vpack.c.b16 %v442, %v441
    %555 = vmatprep.subr.bf16.mxu0 0
    %556 = vmatpush1.bf16.msra.mxu0 %v450
    %557 = vmatprep.subr.bf16.mxu0 0
    %558 = vmatpush1.bf16.msra.mxu0 %v449
    %559 = vmatprep.subr.bf16.mxu0 0
    %560 = vmatpush1.bf16.msra.mxu0 %v448
    %561 = vmatprep.subr.bf16.mxu0 0
    %562 = vmatpush1.bf16.msra.mxu0 %v447
    %563 = vmatprep.subr.bf16.mxu0 0
    %564 = vmatpush1.bf16.msra.mxu0 %v446
    %565 = vmatprep.subr.bf16.mxu0 0
    %566 = vmatpush1.bf16.msra.mxu0 %v445
    %567 = vmatprep.subr.bf16.mxu0 0
    %568 = vmatpush1.bf16.msra.mxu0 %v444
    %569 = vmatprep.subr.bf16.mxu0 0
    %570 = vmatpush1.bf16.msra.mxu0 %v443
    %571 = vmatprep.subr.bf16.mxu0 0
    %572 = vmatpush2.bf16.msra.mxu0 %v458
    %573 = vmatprep.subr.bf16.mxu0 0
    %574 = vmatpush2.bf16.msra.mxu0 %v457
    %575 = vmatprep.subr.bf16.mxu0 0
    %576 = vmatpush2.bf16.msra.mxu0 %v456
    %577 = vmatprep.subr.bf16.mxu0 0
    %578 = vmatpush2.bf16.msra.mxu0 %v455
    %579 = vmatprep.subr.bf16.mxu0 0
    %580 = vmatpush2.bf16.msra.mxu0 %v454
    %581 = vmatprep.subr.bf16.mxu0 0
    %582 = vmatpush2.bf16.msra.mxu0 %v453
    %583 = vmatprep.subr.bf16.mxu0 0
    %584 = vmatpush2.bf16.msra.mxu0 %v452
    %585 = vmatprep.subr.bf16.mxu0 0
    %586 = vmatpush2.bf16.msra.mxu0 %v451
    %587 = vmatprep.mubr.bf16.mxu0 %v206
    %588 = vmatmul.mubr.bf16.gmra.mxu0 %v205
    %v589 = vpop.f32.mrf.mxu0
    %v590 = vadd.f32 %v192, %v589
    %v591 = vpop.f32.mrf.mxu0
    %v592 = vpop.f32.mrf.mxu0
    %v593 = vpop.f32.mrf.mxu0
    %594 = vdwg.mxu0
    %595 = vmatprep.subr.bf16.mxu0 0
    %596 = vmatpush1.bf16.msra.mxu0 %v466
    %597 = vmatprep.subr.bf16.mxu0 0
    %598 = vmatpush1.bf16.msra.mxu0 %v465
    %599 = vmatprep.subr.bf16.mxu0 0
    %600 = vmatpush1.bf16.msra.mxu0 %v464
    %601 = vmatprep.subr.bf16.mxu0 0
    %602 = vmatpush1.bf16.msra.mxu0 %v463
    %603 = vmatprep.subr.bf16.mxu0 0
    %604 = vmatpush1.bf16.msra.mxu0 %v462
    %605 = vmatprep.subr.bf16.mxu0 0
    %606 = vmatpush1.bf16.msra.mxu0 %v461
    %607 = vmatprep.subr.bf16.mxu0 0
    %608 = vmatpush1.bf16.msra.mxu0 %v460
    %609 = vmatprep.subr.bf16.mxu0 0
    %610 = vmatpush1.bf16.msra.mxu0 %v459
    %611 = vmatprep.subr.bf16.mxu0 0
    %612 = vmatpush2.bf16.msra.mxu0 %v474
    %613 = vmatprep.subr.bf16.mxu0 0
    %614 = vmatpush2.bf16.msra.mxu0 %v473
    %615 = vmatprep.subr.bf16.mxu0 0
    %616 = vmatpush2.bf16.msra.mxu0 %v472
    %617 = vmatprep.subr.bf16.mxu0 0
    %618 = vmatpush2.bf16.msra.mxu0 %v471
    %619 = vmatprep.subr.bf16.mxu0 0
    %620 = vmatpush2.bf16.msra.mxu0 %v470
    %621 = vmatprep.subr.bf16.mxu0 0
    %622 = vmatpush2.bf16.msra.mxu0 %v469
    %623 = vmatprep.subr.bf16.mxu0 0
    %624 = vmatpush2.bf16.msra.mxu0 %v468
    %625 = vmatprep.subr.bf16.mxu0 0
    %626 = vmatpush2.bf16.msra.mxu0 %v467
    %627 = vmatprep.mubr.bf16.mxu0 %v208
    %628 = vmatmul.mubr.bf16.gmra.mxu0 %v207
    %v629 = vpop.f32.mrf.mxu0
    %v630 = vadd.f32 %v590, %v629
    %v631 = vpop.f32.mrf.mxu0
    %v632 = vpop.f32.mrf.mxu0
    %v633 = vpop.f32.mrf.mxu0
    %634 = vdwg.mxu0
    %635 = vmatprep.subr.bf16.mxu0 0
    %636 = vmatpush1.bf16.msra.mxu0 %v482
    %637 = vmatprep.subr.bf16.mxu0 0
    %638 = vmatpush1.bf16.msra.mxu0 %v481
    %639 = vmatprep.subr.bf16.mxu0 0
    %640 = vmatpush1.bf16.msra.mxu0 %v480
    %641 = vmatprep.subr.bf16.mxu0 0
    %642 = vmatpush1.bf16.msra.mxu0 %v479
    %643 = vmatprep.subr.bf16.mxu0 0
    %644 = vmatpush1.bf16.msra.mxu0 %v478
    %645 = vmatprep.subr.bf16.mxu0 0
    %646 = vmatpush1.bf16.msra.mxu0 %v477
    %647 = vmatprep.subr.bf16.mxu0 0
    %648 = vmatpush1.bf16.msra.mxu0 %v476
    %649 = vmatprep.subr.bf16.mxu0 0
    %650 = vmatpush1.bf16.msra.mxu0 %v475
    %651 = vmatprep.subr.bf16.mxu0 0
    %652 = vmatpush2.bf16.msra.mxu0 %v490
    %653 = vmatprep.subr.bf16.mxu0 0
    %654 = vmatpush2.bf16.msra.mxu0 %v489
    %655 = vmatprep.subr.bf16.mxu0 0
    %656 = vmatpush2.bf16.msra.mxu0 %v488
    %657 = vmatprep.subr.bf16.mxu0 0
    %658 = vmatpush2.bf16.msra.mxu0 %v487
    %659 = vmatprep.subr.bf16.mxu0 0
    %660 = vmatpush2.bf16.msra.mxu0 %v486
    %661 = vmatprep.subr.bf16.mxu0 0
    %662 = vmatpush2.bf16.msra.mxu0 %v485
    %663 = vmatprep.subr.bf16.mxu0 0
    %664 = vmatpush2.bf16.msra.mxu0 %v484
    %665 = vmatprep.subr.bf16.mxu0 0
    %666 = vmatpush2.bf16.msra.mxu0 %v483
    %667 = vmatprep.mubr.bf16.mxu0 %v210
    %668 = vmatmul.mubr.bf16.gmra.mxu0 %v209
    %v669 = vpop.f32.mrf.mxu0
    %v670 = vadd.f32 %v630, %v669
    %v671 = vpop.f32.mrf.mxu0
    %v672 = vpop.f32.mrf.mxu0
    %v673 = vpop.f32.mrf.mxu0
    %674 = vdwg.mxu0
    %675 = vmatprep.subr.bf16.mxu0 0
    %676 = vmatpush1.bf16.msra.mxu0 %v498
    %677 = vmatprep.subr.bf16.mxu0 0
    %678 = vmatpush1.bf16.msra.mxu0 %v497
    %679 = vmatprep.subr.bf16.mxu0 0
    %680 = vmatpush1.bf16.msra.mxu0 %v496
    %681 = vmatprep.subr.bf16.mxu0 0
    %682 = vmatpush1.bf16.msra.mxu0 %v495
    %683 = vmatprep.subr.bf16.mxu0 0
    %684 = vmatpush1.bf16.msra.mxu0 %v494
    %685 = vmatprep.subr.bf16.mxu0 0
    %686 = vmatpush1.bf16.msra.mxu0 %v493
    %687 = vmatprep.subr.bf16.mxu0 0
    %688 = vmatpush1.bf16.msra.mxu0 %v492
    %689 = vmatprep.subr.bf16.mxu0 0
    %690 = vmatpush1.bf16.msra.mxu0 %v491
    %691 = vmatprep.subr.bf16.mxu0 0
    %692 = vmatpush2.bf16.msra.mxu0 0
    %693 = vmatprep.subr.bf16.mxu0 0
    %694 = vmatpush2.bf16.msra.mxu0 0
    %695 = vmatprep.subr.bf16.mxu0 0
    %696 = vmatpush2.bf16.msra.mxu0 0
    %697 = vmatprep.subr.bf16.mxu0 0
    %698 = vmatpush2.bf16.msra.mxu0 0
    %699 = vmatprep.subr.bf16.mxu0 0
    %700 = vmatpush2.bf16.msra.mxu0 0
    %701 = vmatprep.subr.bf16.mxu0 0
    %702 = vmatpush2.bf16.msra.mxu0 0
    %703 = vmatprep.subr.bf16.mxu0 0
    %704 = vmatpush2.bf16.msra.mxu0 0
    %705 = vmatprep.subr.bf16.mxu0 0
    %706 = vmatpush2.bf16.msra.mxu0 0
    %707 = vmatprep.mubr.bf16.mxu0 0
    %708 = vmatmul.mubr.bf16.gmra.mxu0 %v211
    %v709 = vpop.f32.mrf.mxu0
    %v710 = vadd.f32 %v670, %v709
    %v711 = vpop.f32.mrf.mxu0
    %v712 = vpop.f32.mrf.mxu0
    %v713 = vpop.f32.mrf.mxu0
    %714 = vdwg.mxu0
    %v715 = vmax.f32 %v710, 0.0
    %v716 = vpack.c.bf16 %v715, %v715
    %v717 = vld [vmem:[%s3] sm:$0xf]
    %v718 = vld [vmem:[%s3 + $0x4] sm:$0xf]
    %v719 = vld [vmem:[%s3 + $0x8] sm:$0xf]
    %v720 = vld [vmem:[%s3 + $0xc] sm:$0xf]
    %v721 = vld [vmem:[%s3 + $0x10] sm:$0xf]
    %v722 = vld [vmem:[%s3 + $0x14] sm:$0xf]
    %v723 = vld [vmem:[%s3 + $0x18] sm:$0xf]
    %v724 = vld [vmem:[%s3 + $0x1c] sm:$0xf]
    %v725 = vld [vmem:[%s3 + $0x20] sm:$0xf]
    %v726 = vld [vmem:[%s3 + $0x24] sm:$0xf]
    %v727 = vld [vmem:[%s3 + $0x28] sm:$0xf]
    %v728 = vld [vmem:[%s3 + $0x2c] sm:$0xf]
    %v729 = vld [vmem:[%s3 + $0x30] sm:$0xf]
    %v730 = vld [vmem:[%s3 + $0x34] sm:$0xf]
    %v731 = vld [vmem:[%s3 + $0x38] sm:$0xf]
    %v732 = vld [vmem:[%s3 + $0x3c] sm:$0xf]
    %v733 = vld [vmem:[%s4] sm:$0x1]
    %v735 = vlaneseq
    %v736 = vshrl.u32 %v735, 7
    %v737 = vsub.s32 0, %v736
    %v738 = vrot.slane %v733, %v737
    %v756 = vunpack.c.l.b16 %v717
    %v757 = vunpack.c.l.b16 %v718
    %v758 = vunpack.c.l.b16 %v719
    %v759 = vunpack.c.l.b16 %v720
    %v760 = vunpack.c.l.b16 %v721
    %v761 = vunpack.c.l.b16 %v722
    %v762 = vunpack.c.l.b16 %v723
    %v763 = vunpack.c.l.b16 %v724
    %v764 = vunpack.c.l.b16 %v725
    %v765 = vunpack.c.l.b16 %v726
    %v766 = vunpack.c.l.b16 %v727
    %v767 = vunpack.c.l.b16 %v728
    %v768 = vunpack.c.l.b16 %v729
    %v769 = vunpack.c.l.b16 %v730
    %v770 = vunpack.c.l.b16 %v731
    %v771 = vunpack.c.l.b16 %v732
    %v772 = vpack.c.b16 %v757, %v756
    %v773 = vpack.c.b16 %v759, %v758
    %v774 = vpack.c.b16 %v761, %v760
    %v775 = vpack.c.b16 %v763, %v762
    %v776 = vpack.c.b16 %v765, %v764
    %v777 = vpack.c.b16 %v767, %v766
    %v778 = vpack.c.b16 %v769, %v768
    %v779 = vpack.c.b16 %v771, %v770
    %788 = vmatprep.subr.bf16.mxu0 0
    %789 = vmatpush1.bf16.msra.mxu0 %v779
    %790 = vmatprep.subr.bf16.mxu0 0
    %791 = vmatpush1.bf16.msra.mxu0 %v778
    %792 = vmatprep.subr.bf16.mxu0 0
    %793 = vmatpush1.bf16.msra.mxu0 %v777
    %794 = vmatprep.subr.bf16.mxu0 0
    %795 = vmatpush1.bf16.msra.mxu0 %v776
    %796 = vmatprep.subr.bf16.mxu0 0
    %797 = vmatpush1.bf16.msra.mxu0 %v775
    %798 = vmatprep.subr.bf16.mxu0 0
    %799 = vmatpush1.bf16.msra.mxu0 %v774
    %800 = vmatprep.subr.bf16.mxu0 0
    %801 = vmatpush1.bf16.msra.mxu0 %v773
    %802 = vmatprep.subr.bf16.mxu0 0
    %803 = vmatpush1.bf16.msra.mxu0 %v772
    %804 = vmatprep.subr.bf16.mxu0 0
    %805 = vmatpush2.bf16.msra.mxu0 0
    %806 = vmatprep.subr.bf16.mxu0 0
    %807 = vmatpush2.bf16.msra.mxu0 0
    %808 = vmatprep.subr.bf16.mxu0 0
    %809 = vmatpush2.bf16.msra.mxu0 0
    %810 = vmatprep.subr.bf16.mxu0 0
    %811 = vmatpush2.bf16.msra.mxu0 0
    %812 = vmatprep.subr.bf16.mxu0 0
    %813 = vmatpush2.bf16.msra.mxu0 0
    %814 = vmatprep.subr.bf16.mxu0 0
    %815 = vmatpush2.bf16.msra.mxu0 0
    %816 = vmatprep.subr.bf16.mxu0 0
    %817 = vmatpush2.bf16.msra.mxu0 0
    %818 = vmatprep.subr.bf16.mxu0 0
    %819 = vmatpush2.bf16.msra.mxu0 0
    %820 = vmatprep.mubr.bf16.mxu0 0
    %821 = vmatmul.mubr.bf16.gmra.mxu0 %v716
    %v822 = vpop.f32.mrf.mxu0
    %v823 = vadd.f32 %v738, %v822
    %v824 = vpop.f32.mrf.mxu0
    %v825 = vpop.f32.mrf.mxu0
    %v826 = vpop.f32.mrf.mxu0
    %827 = vdwg.mxu0
    %v828 = vmax.f32 %v823, 0.0
    %v829 = vpack.c.bf16 %v828, %v828
    %v830 = vld [vmem:[%s5] sm:$0xf]
    %v831 = vld [vmem:[%s5 + $0x4] sm:$0xf]
    %v832 = vld [vmem:[%s5 + $0x8] sm:$0xf]
    %v833 = vld [vmem:[%s5 + $0xc] sm:$0xf]
    %v834 = vld [vmem:[%s5 + $0x10] sm:$0xf]
    %v835 = vld [vmem:[%s5 + $0x14] sm:$0xf]
    %v836 = vld [vmem:[%s5 + $0x18] sm:$0xf]
    %v837 = vld [vmem:[%s5 + $0x1c] sm:$0xf]
    %v838 = vld [vmem:[%s5 + $0x20] sm:$0xf]
    %v839 = vld [vmem:[%s5 + $0x24] sm:$0xf]
    %v840 = vld [vmem:[%s5 + $0x28] sm:$0xf]
    %v841 = vld [vmem:[%s5 + $0x2c] sm:$0xf]
    %v842 = vld [vmem:[%s5 + $0x30] sm:$0xf]
    %v843 = vld [vmem:[%s5 + $0x34] sm:$0xf]
    %v844 = vld [vmem:[%s5 + $0x38] sm:$0xf]
    %v845 = vld [vmem:[%s5 + $0x3c] sm:$0xf]
    %v846 = vld [vmem:[%s6] sm:$0x1]
    %v848 = vlaneseq
    %v849 = vshrl.u32 %v848, 7
    %v850 = vsub.s32 0, %v849
    %v851 = vrot.slane %v846, %v850
    %v869 = vunpack.c.l.b16 %v830
    %v870 = vunpack.c.l.b16 %v831
    %v871 = vunpack.c.l.b16 %v832
    %v872 = vunpack.c.l.b16 %v833
    %v873 = vunpack.c.l.b16 %v834
    %v874 = vunpack.c.l.b16 %v835
    %v875 = vunpack.c.l.b16 %v836
    %v876 = vunpack.c.l.b16 %v837
    %v877 = vunpack.c.l.b16 %v838
    %v878 = vunpack.c.l.b16 %v839
    %v879 = vunpack.c.l.b16 %v840
    %v880 = vunpack.c.l.b16 %v841
    %v881 = vunpack.c.l.b16 %v842
    %v882 = vunpack.c.l.b16 %v843
    %v883 = vunpack.c.l.b16 %v844
    %v884 = vunpack.c.l.b16 %v845
    %v885 = vpack.c.b16 %v870, %v869
    %v886 = vpack.c.b16 %v872, %v871
    %v887 = vpack.c.b16 %v874, %v873
    %v888 = vpack.c.b16 %v876, %v875
    %v889 = vpack.c.b16 %v878, %v877
    %v890 = vpack.c.b16 %v880, %v879
    %v891 = vpack.c.b16 %v882, %v881
    %v892 = vpack.c.b16 %v884, %v883
    %901 = vmatprep.subr.bf16.mxu0 0
    %902 = vmatpush1.bf16.msra.mxu0 %v892
    %903 = vmatprep.subr.bf16.mxu0 0
    %904 = vmatpush1.bf16.msra.mxu0 %v891
    %905 = vmatprep.subr.bf16.mxu0 0
    %906 = vmatpush1.bf16.msra.mxu0 %v890
    %907 = vmatprep.subr.bf16.mxu0 0
    %908 = vmatpush1.bf16.msra.mxu0 %v889
    %909 = vmatprep.subr.bf16.mxu0 0
    %910 = vmatpush1.bf16.msra.mxu0 %v888
    %911 = vmatprep.subr.bf16.mxu0 0
    %912 = vmatpush1.bf16.msra.mxu0 %v887
    %913 = vmatprep.subr.bf16.mxu0 0
    %914 = vmatpush1.bf16.msra.mxu0 %v886
    %915 = vmatprep.subr.bf16.mxu0 0
    %916 = vmatpush1.bf16.msra.mxu0 %v885
    %917 = vmatprep.subr.bf16.mxu0 0
    %918 = vmatpush2.bf16.msra.mxu0 0
    %919 = vmatprep.subr.bf16.mxu0 0
    %920 = vmatpush2.bf16.msra.mxu0 0
    %921 = vmatprep.subr.bf16.mxu0 0
    %922 = vmatpush2.bf16.msra.mxu0 0
    %923 = vmatprep.subr.bf16.mxu0 0
    %924 = vmatpush2.bf16.msra.mxu0 0
    %925 = vmatprep.subr.bf16.mxu0 0
    %926 = vmatpush2.bf16.msra.mxu0 0
    %927 = vmatprep.subr.bf16.mxu0 0
    %928 = vmatpush2.bf16.msra.mxu0 0
    %929 = vmatprep.subr.bf16.mxu0 0
    %930 = vmatpush2.bf16.msra.mxu0 0
    %931 = vmatprep.subr.bf16.mxu0 0
    %932 = vmatpush2.bf16.msra.mxu0 0
    %933 = vmatprep.mubr.bf16.mxu0 0
    %934 = vmatmul.mubr.bf16.gmra.mxu0 %v829
    %v935 = vpop.f32.mrf.mxu0
    %v936 = vadd.f32 %v851, %v935
    %v937 = vpop.f32.mrf.mxu0
    %v938 = vpop.f32.mrf.mxu0
    %v939 = vpop.f32.mrf.mxu0
    %940 = vdwg.mxu0
    %941 = vmax.xlane.f32.xlu0 %v936
    %v942 = vpop.xlane.xlu0 %941
    %v943 = vsub.f32 %v936, %v942
    %v944 = vmul.f32 %v943, 1.442695
    %v945 = vpow.pop %v944
    %946 = vadd.xlane.f32.xlu0 %v945
    %v947 = vpop.xlane.xlu0 %946
    %v948 = vlog2.pop %v947
    %v949 = vmul.f32 %v948, 0.6931472
    %v950 = vsub.f32 %v943, %v949
    %vm951 = vcmask 80896
    %952 = vst.msk [vmem:[#allocation3] sm:$0xff] %vm951, %v950
    // Predicated region
    $region30: #{modelo_forward.1} parent=1 // pred_check
      _
    $region31: #{modelo_forward.1} parent=1 // pred_check_branch
      %954 = sbr.rel (0) target = $region33
    $region32: #{modelo_forward.1} parent=1 // pred_region
      %s956 = ssub.s32 128, 128
      %957 = vsyncadd [#allocation4], %s956
      %s959 = sshll.u32 [#allocation3], 4
      %s960 = int_to_ptr.vmem [resolvable:$true] %s959
      %962 = dma.vmem_to_hbm [thread:$0]  %s960, 128, %s7, [#allocation4]
    $region33: #{modelo_forward.1} parent=1 // pred_fallthru
      _
    // Predicated region
    $region34: #{modelo_forward.1} parent=1 // pred_check
      _
    $region35: #{modelo_forward.1} parent=1 // pred_check_branch
      %964 = sbr.rel (0) target = $region37
    $region36: #{modelo_forward.1} parent=1 // pred_region
      %965 = dma.done [#allocation4], 128
    $region37: #{modelo_forward.1} parent=1 // pred_fallthru
      _
    %966 = vsyncpa [#allocation4], 1

</llo_original>
